<compile_context>
chip_gen: v7x
topology: tpu7x:2x2x1
jax: 0.10.0
libtpu: 0.0.40
codegen_flags: <defaults>
</compile_context>

<pallas_src>
import functools
import math

import jax
import jax.numpy as jnp
from jax.experimental import pallas as pl
from jax.experimental.pallas import tpu as pltpu

_MIB = 1024 * 1024
# Packed-sublane quantum per itemsize (f32 -> 8, bf16 -> 16, int8/fp8 -> 32).
_SUBLANE_QUANTUM = {4: 8, 2: 16, 1: 32}


def _round_up(x, m):
    return ((x + m - 1) // m) * m


def _round_down(x, m):
    return (x // m) * m


def _pick_row_split(n, chw, quantum):
    """Pick s | chw so rows R = n*s fill the sublane quantum for tiny batches.

    Each row is reduced independently, so splitting a sample over s rows only
    needs a tiny (n, s) -> (n, 1) combine in the wrapper, but avoids DMAing
    mostly-empty sublane groups when n < quantum.
    """
    if n >= quantum or chw <= 1:
        return 1
    best_s, best_util = 1, n / _round_up(n, quantum)
    for s in range(2, min(chw, 8 * quantum) + 1):
        if chw % s:
            continue
        if chw // s < 8:            # keep rows from becoming tiny fragments
            continue
        util = (n * s) / _round_up(n * s, quantum)
        if util > best_util + 1e-9:
            best_s, best_util = s, util
            if util >= 1.0 - 1e-9:
                break               # smallest s with full sublane use -> longest rows
    return best_s


def _means_kernel(x_ref, o_ref, acc_ref, *, inv_count, tk, k_valid, mask_k, n_par):
    """Row-sum accumulation of (tm, tk) tiles into a lane-wide f32 accumulator.

    grid = (row_tiles, k_tiles); K (reduction) is the last grid axis so the
    output block and acc_ref stay resident across it.  Per K step only VPU
    adds run; the single cross-lane reduce + 1/CHW scale run at k == last.
    """
    k = pl.program_id(1)

    @pl.when(k == 0)
    def _init():
        acc_ref[...] = jnp.zeros_like(acc_ref)

    tm, chunk = acc_ref.shape
    n_chunks = tk // chunk

    if mask_k:
        # Ragged last K block: zero lanes at/after the true column count.
        lane = jax.lax.broadcasted_iota(jnp.int32, (tm, chunk), 1)
        base = k * tk

    # A few independent partial accumulators give the (narrow-tm) add chain
    # some ILP; combined below before the single accumulator update.
    partials = [None] * n_par
    for c in range(n_chunks):
        x_c = x_ref[:, c * chunk:(c + 1) * chunk].astype(jnp.float32)
        if mask_k:
            valid = k_valid - (base + c * chunk)          # traced scalar
            x_c = jnp.where(lane < valid, x_c, 0.0)
        p = c % n_par
        partials[p] = x_c if partials[p] is None else partials[p] + x_c

    total = partials[0]
    for p in partials[1:]:
        if p is not None:
            total = total + p
    acc_ref[...] += total

    @pl.when(k == pl.num_programs(1) - 1)
    def _finalize():
        row_sum = jnp.sum(acc_ref[...], axis=1, keepdims=True)   # (tm, 1), XLU once
        o_ref[...] = (row_sum * inv_count).astype(o_ref.dtype)


def means_forward(x, *, vmem_limit_bytes=None):
    """Pallas TPU equivalent of `Means`: mean over dims (1, 2, 3), shape (N, 1)."""
    n = x.shape[0]
    chw = math.prod(x.shape[1:])
    itemsize = jnp.dtype(x.dtype).itemsize
    quantum = _SUBLANE_QUANTUM.get(itemsize, 8)
    out_dtype = x.dtype if jnp.issubdtype(x.dtype, jnp.floating) else jnp.float32

    # Flatten the reduced axes; for tiny batches spread each sample's reduction
    # over s rows (free contiguous reshape) so DMA'd sublanes carry real data.
    s = _pick_row_split(n, chw, quantum)
    x_flat = x.reshape(n * s, chw // s)
    R, Kd = x_flat.shape

    # --- VMEM budget (per generation); Pallas double-buffers the input block.
    try:
        info = pltpu.get_tpu_info()
        vmem_cap = int(getattr(info, "vmem_capacity_bytes", 0)) or 64 * _MIB
    except Exception:
        vmem_cap = 64 * _MIB            # conservative fallback (v7x-sized)
    if vmem_limit_bytes is None:
        # ~75% of physical VMEM, capped: v7x (64 MiB) -> 48 MiB, v5e/v6e -> 96 MiB.
        vmem_limit_bytes = min(vmem_cap * 3 // 4, 100 * _MIB)
    block_budget = max(512 * 1024, min(16 * _MIB, vmem_limit_bytes // 3))

    # --- Row tile: modest, quantum-aligned; >= 2 row tiles for v7x megacore.
    tm_cap = 256
    if R <= quantum:
        tm = R                                    # "full dim" escape, block <= array
    else:
        tm = min(_round_up(R, quantum), tm_cap)
        if tm >= R:                               # would be a single row tile
            tm = max(quantum, _round_up(-(-R // 2), quantum))

    # --- K tile: lane-dense (multiple of 128), sized from the VMEM budget.
    if Kd <= 128:
        tk = Kd                                   # "full dim" escape, no masking
    else:
        tk = max(128, min(_round_down(block_budget // (tm * itemsize), 128),
                          32768, _round_down(Kd, 128)))
    mask_k = (Kd % tk) != 0                       # only the last K block is ragged
    chunk = min(tk, 128)
    n_par = max(1, min(4, 256 // max(tm, 1)))

    grid = (pl.cdiv(R, tm), pl.cdiv(Kd, tk))
    inv_count = 1.0 / float(chw)

    kernel = functools.partial(
        _means_kernel, inv_count=inv_count, tk=tk, k_valid=Kd,
        mask_k=mask_k, n_par=n_par)

    out = pl.pallas_call(
        kernel,
        out_shape=jax.ShapeDtypeStruct((R, 1), out_dtype),
        grid_spec=pltpu.PrefetchScalarGridSpec(
            num_scalar_prefetch=0,
            grid=grid,
            in_specs=[pl.BlockSpec((tm, tk), lambda i, k: (i, k))],
            out_specs=pl.BlockSpec((tm, 1), lambda i, k: (i, 0)),
            scratch_shapes=[pltpu.VMEM((tm, chunk), jnp.float32)],
        ),
        compiler_params=pltpu.CompilerParams(
            # Row tiles are independent -> parallel (megacore on v7x);
            # K is the reduction axis with a resident accumulator -> arbitrary.
            dimension_semantics=("parallel", "arbitrary"),
            vmem_limit_bytes=int(vmem_limit_bytes),
        ),
        cost_estimate=pl.CostEstimate(
            flops=n * chw,
            transcendentals=0,
            bytes_accessed=n * chw * itemsize + R * jnp.dtype(out_dtype).itemsize,
        ),
    )(x_flat)

    if s > 1:
        # Combine per-sample partial means (each already scaled by 1/CHW).
        out = (out.reshape(n, s).astype(jnp.float32)
                  .sum(axis=1, keepdims=True).astype(out_dtype))
    return out


if __name__ == "__main__":
    key = jax.random.PRNGKey(0)
    k1, k2, k3, k4 = jax.random.split(key, 4)

    # Small NCHW shape consistent with the module.
    N, C, H, W = 2, 4, 16, 16
    x = jax.random.normal(k1, (N, C, H, W), dtype=jnp.float32)
    y = jax.block_until_ready(means_forward(x))
    y_ref = jnp.mean(x, axis=(1, 2, 3))[:, None]
    assert y.shape == (N, 1), y.shape
    assert jnp.allclose(y, y_ref, atol=1e-5, rtol=1e-5)

    # Awkward dims: N not a multiple of 8, odd CHW -> row-split + full-dim tiles.
    x2 = jax.random.normal(k2, (3, 5, 7, 9), dtype=jnp.float32)
    y2 = jax.block_until_ready(means_forward(x2))
    y2_ref = jnp.mean(x2, axis=(1, 2, 3))[:, None]
    assert y2.shape == (3, 1), y2.shape
    assert jnp.allclose(y2, y2_ref, atol=1e-5, rtol=1e-5)

    # Multi-row-tile, multi-K-tile path with a ragged (masked) last lane block.
    x3 = jax.random.normal(k3, (16, 3, 7, 11), dtype=jnp.float32)
    y3 = jax.block_until_ready(means_forward(x3))
    y3_ref = jnp.mean(x3, axis=(1, 2, 3))[:, None]
    assert y3.shape == (16, 1), y3.shape
    assert jnp.allclose(y3, y3_ref, atol=1e-5, rtol=1e-5)

    # bf16 input: packed-sublane row quantum (16) + f32 accumulation.
    x4 = jax.random.normal(k4, (4, 8, 16, 16), dtype=jnp.bfloat16)
    y4 = jax.block_until_ready(means_forward(x4))
    y4_ref = jnp.mean(x4.astype(jnp.float32), axis=(1, 2, 3))[:, None]
    assert y4.shape == (4, 1), y4.shape
    assert jnp.allclose(y4.astype(jnp.float32), y4_ref, atol=1e-2, rtol=1e-2)

    print("KERNEL_OK")
</pallas_src>

<mosaic_0001>
module attributes {stable_mosaic.version = 11 : i64} {
  func.func @_means_kernel(%arg0: i32, %arg1: i32, %arg2: memref<8x256xf32, #tpu.memory_space<vmem>>, %arg3: memref<8x1xf32, #tpu.memory_space<vmem>>, %arg4: memref<8x128xf32, #tpu.memory_space<vmem>>) attributes {dimension_semantics = [#tpu.dimension_semantics<parallel>, #tpu.dimension_semantics<arbitrary>], iteration_bounds = array<i64: 1, 1>, scalar_prefetch = 0 : i64, scratch_operands = 1 : i64, tpu.core_type = #tpu.core_type<tc>, window_params = [{transform_indices = @transform_0, window_bounds = array<i64: 8, 256>}, {transform_indices = @transform_1, window_bounds = array<i64: 8, 1>}]} {
    %c0_i32 = arith.constant 0 : i32
    %0 = arith.cmpi eq, %arg1, %c0_i32 : i32
    %1 = arith.extui %0 : i1 to i32
    %c0_i32_0 = arith.constant 0 : i32
    %2 = arith.cmpi ne, %1, %c0_i32_0 : i32
    scf.if %2 {
      %cst = arith.constant 0.000000e+00 : f32
      %12 = vector.broadcast %cst : f32 to vector<8x128xf32>
      %c0_9 = arith.constant 0 : index
      %c0_10 = arith.constant 0 : index
      %13 = vector.load %arg4[%c0_9, %c0_10] : memref<8x128xf32, #tpu.memory_space<vmem>>, vector<8x128xf32>
      tpu.vector_store %arg4[%c0_9, %c0_10], %12 {strides = array<i32>} : memref<8x128xf32, #tpu.memory_space<vmem>>, vector<8x128xf32>,
    } else {
    }
    %c0 = arith.constant 0 : index
    %c0_1 = arith.constant 0 : index
    %3 = vector.load %arg2[%c0, %c0_1] : memref<8x256xf32, #tpu.memory_space<vmem>>, vector<8x128xf32>
    %c0_2 = arith.constant 0 : index
    %c128 = arith.constant 128 : index
    %4 = vector.load %arg2[%c0_2, %c128] : memref<8x256xf32, #tpu.memory_space<vmem>>, vector<8x128xf32>
    %5 = arith.addf %3, %4 : vector<8x128xf32>
    %c0_3 = arith.constant 0 : index
    %c0_4 = arith.constant 0 : index
    %6 = vector.load %arg4[%c0_3, %c0_4] : memref<8x128xf32, #tpu.memory_space<vmem>>, vector<8x128xf32>
    %7 = arith.addf %6, %5 : vector<8x128xf32>
    %c0_5 = arith.constant 0 : index
    %c0_6 = arith.constant 0 : index
    %8 = vector.load %arg4[%c0_5, %c0_6] : memref<8x128xf32, #tpu.memory_space<vmem>>, vector<8x128xf32>
    tpu.vector_store %arg4[%c0_5, %c0_6], %7 {strides = array<i32>} : memref<8x128xf32, #tpu.memory_space<vmem>>, vector<8x128xf32>,
    %c0_i32_7 = arith.constant 0 : i32
    %9 = arith.cmpi eq, %arg1, %c0_i32_7 : i32
    %10 = arith.extui %9 : i1 to i32
    %c0_i32_8 = arith.constant 0 : i32
    %11 = arith.cmpi ne, %10, %c0_i32_8 : i32
    scf.if %11 {
      %c0_9 = arith.constant 0 : index
      %c0_10 = arith.constant 0 : index
      %12 = vector.load %arg4[%c0_9, %c0_10] : memref<8x128xf32, #tpu.memory_space<vmem>>, vector<8x128xf32>
      %cst = arith.constant dense<0.000000e+00> : vector<8xf32>
      %13 = vector.multi_reduction <add>, %12, %cst [1] : vector<8x128xf32> to vector<8xf32>
      %14 = vector.shape_cast %13 : vector<8xf32> to vector<8x1xf32>
      %cst_11 = arith.constant 9.765625E-4 : f32
      %15 = vector.broadcast %cst_11 : f32 to vector<8x1xf32>
      %16 = arith.mulf %14, %15 : vector<8x1xf32>
      %c0_12 = arith.constant 0 : index
      %c0_13 = arith.constant 0 : index
      %17 = vector.load %arg3[%c0_12, %c0_13] : memref<8x1xf32, #tpu.memory_space<vmem>>, vector<8x1xf32>
      tpu.vector_store %arg3[%c0_12, %c0_13], %16 {strides = array<i32>} : memref<8x1xf32, #tpu.memory_space<vmem>>, vector<8x1xf32>,
    } else {
    }
    return
  }
  func.func @transform_0(%arg0: i32, %arg1: i32) -> (i32, i32) {
    %c0_i32 = arith.constant 0 : i32
    return %arg0, %arg1 : i32, i32
  }
  func.func @transform_1(%arg0: i32, %arg1: i32) -> (i32, i32) {
    %c0_i32 = arith.constant 0 : i32
    %c0_i32_0 = arith.constant 0 : i32
    return %arg0, %c0_i32 : i32, i32
  }
}

</mosaic_0001>

<llo_original>
// kernel: tpu_custom_call.1
$region0: #{tpu_custom_call.1}
  #allocation0 [shape = 'u32[]', space=smem, size = 0x4, offset = 0x4, fixed_abs, tag = 'smem constant byte address 0x4 - core index']
  #allocation1 [shape = 'u32[144,128]{1,0:T(1,128)}', space=vmem, size = 0x12000, scoped, tag = 'internal scratch']
  #allocation2 [shape = 'f32[8,128]{1,0:T(8,128)}', space=vmem, size = 0x1000, scoped, tag = 'scratch operand']
  %s0 = inlined_call_operand.hbm [shape: f32[8,256], index: 0, kind: input, shape index: {}]
  %s1 = inlined_call_operand.vmem [shape: f32[8,1], index: 1, kind: output, shape index: {}]
  %s2 = sld [smem:[#allocation0]]
  $region26: #{tpu_custom_call.1} parent=0
    _
  %s4 = ssub.s32 1, %s2
  %s5 = scalar_select 0, %s4, %s2
  $region1: #{tpu_custom_call.1} parent=0
    #allocation3 [shape = 'u8[8192]{0}', space=vmem, size = 0x2000, scoped, tag = 'input window, operand 0, single buffered']
    #allocation4 [shape = 's32[1]{0}', space=sflag, size = 0x4, scoped, tag = 'scoped memory for tpu_custom_call.1']
    %6 = vsyncpa [#allocation4], 0
    // Predicated region
    $region2: #{tpu_custom_call.1} parent=1 // pred_check
      _
    $region3: #{tpu_custom_call.1} parent=1 // pred_check_branch
      %8 = sbr.rel (0) target = $region5
    $region4: #{tpu_custom_call.1} parent=1 // pred_region
      %s10 = ssub.s32 256, 256
      %11 = vsyncadd [#allocation4], %s10
      %s13 = sshll.u32 [#allocation3], 4
      %s14 = int_to_ptr.vmem [resolvable:$true] %s13
      %16 = dma.hbm_to_vmem [thread:$0]  %s0, 256, %s14, [#allocation4]
    $region5: #{tpu_custom_call.1} parent=1 // pred_fallthru
      _
    // Predicated region
    $region6: #{tpu_custom_call.1} parent=1 // pred_check
      _
    $region7: #{tpu_custom_call.1} parent=1 // pred_check_branch
      %18 = sbr.rel (0) target = $region9
    $region8: #{tpu_custom_call.1} parent=1 // pred_region
      %19 = dma.done [#allocation4], 256
    $region9: #{tpu_custom_call.1} parent=1 // pred_fallthru
      _
    %p20 = scmp.eq.s32.totalorder 0, 0
    // Predicated region
    $region10: #{tpu_custom_call.1} parent=1 // pred_check
      %p21 = pneg %p20
    $region11: #{tpu_custom_call.1} parent=1 // pred_check_branch
      %23 = sbr.rel (%p21) target = $region13
    $region12: #{tpu_custom_call.1} parent=1 // pred_region
      %24 = vst [vmem:[#allocation2] sm:$0xff] 0.0
    $region13: #{tpu_custom_call.1} parent=1 // pred_fallthru
      _
    %v25 = vld [vmem:[#allocation3] sm:$0xff]
    %v26 = vld [vmem:[#allocation3 + $0x8] sm:$0xff]
    %v27 = vadd.f32 %v25, %v26
    %v28 = vld [vmem:[#allocation2] sm:$0xff]
    %v29 = vadd.f32 %v28, %v27
    %30 = vst [vmem:[#allocation2] sm:$0xff] %v29
    // Predicated region
    $region14: #{tpu_custom_call.1} parent=1 // pred_check
      %p31 = pneg %p20
    $region15: #{tpu_custom_call.1} parent=1 // pred_check_branch
      %33 = sbr.rel (%p31) target = $region17
    $region16: #{tpu_custom_call.1} parent=1 // pred_region
      %v34 = vld [vmem:[#allocation2] sm:$0xff]
      %35 = vadd.xlane.f32.xlu0 %v34
      %v36 = vpop.xlane.xlu0 %35
      %v37 = vmul.f32 %v36, 0.0009765625
      %vm38 = vcmask 7168
      %39 = vst.msk [vmem:[%s1] sm:$0xff] %vm38, %v37
    $region17: #{tpu_custom_call.1} parent=1 // pred_fallthru
      _
    // Predicated region
    $region18: #{tpu_custom_call.1} parent=1 // pred_check
      _
    $region19: #{tpu_custom_call.1} parent=1 // pred_check_branch
      %41 = sbr.rel (0) target = $region21
    $region20: #{tpu_custom_call.1} parent=1 // pred_region
      _
    $region21: #{tpu_custom_call.1} parent=1 // pred_fallthru
      _
    // Predicated region
    $region22: #{tpu_custom_call.1} parent=1 // pred_check
      _
    $region23: #{tpu_custom_call.1} parent=1 // pred_check_branch
      %43 = sbr.rel (0) target = $region25
    $region24: #{tpu_custom_call.1} parent=1 // pred_region
      _
    $region25: #{tpu_custom_call.1} parent=1 // pred_fallthru
      _
    %44 = vsyncpa [#allocation4], 1

</llo_original>
